<compile_context>
chip_gen: v5e
topology: v5e:2x2
jax: 0.10.0
libtpu: 0.0.40
codegen_flags: <defaults>
</compile_context>

<pallas_src>
import functools

import jax
import jax.numpy as jnp
import numpy as np
from jax.experimental import pallas as pl
from jax.experimental.pallas import tpu as pltpu


def _deep_bottleneck_kernel(*refs, n_systems):
    """One (row-tile i, vocab-tile v) grid step.

    refs layout:
      refs[:n]                           x_i  [tm, D]  decoder outputs (separate inputs)
      w1_ref [n, D, dim]                 first bottleneck Linear, per-system slices
      b1_ref [1, dim], w2_ref [dim, dim], b2_ref [1, dim]
      wp_ref [dim, tn] (maybe bf16), bp_ref [1, tn] (f32)
      out_ref [tm, tn]
      z_ref  [tm, dim]  VMEM scratch in wp dtype: cached bottleneck output for row tile
    """
    x_refs = refs[:n_systems]
    (w1_ref, b1_ref, w2_ref, b2_ref, wp_ref, bp_ref, out_ref, z_ref) = refs[n_systems:]

    # Bottleneck is vocab-independent: compute it only on the first vocab tile and
    # cache it (already cast to the projection input dtype) in VMEM scratch.
    @pl.when(pl.program_id(1) == 0)
    def _():
        # cat(x) @ W1 == sum_i x_i @ W1_i  (avoids concatenated-lane slicing)
        h = jnp.dot(x_refs[0][...], w1_ref[0], preferred_element_type=jnp.float32)
        for i in range(1, n_systems):           # n_systems is static -> unrolled
            h = h + jnp.dot(x_refs[i][...], w1_ref[i],
                            preferred_element_type=jnp.float32)
        h = jnp.maximum(h + b1_ref[...], 0.0)   # ReLU
        z = jnp.dot(h, w2_ref[...], preferred_element_type=jnp.float32) + b2_ref[...]
        z_ref[...] = z.astype(z_ref.dtype)      # single cast per row tile

    # Output projection for this vocab tile: the dominant, MXU-bound matmul.
    # f32 accumulation; bias added after accumulation in f32.
    out_ref[...] = (
        jnp.dot(z_ref[...], wp_ref[...], preferred_element_type=jnp.float32)
        + bp_ref[...]
    ).astype(out_ref.dtype)


def prepare_params(params, *, projection_dtype=jnp.float32):
    """One-time parameter prep (amortized over all forward calls).

    * Pads Wp / bp along the vocab dim to a multiple of 128 so the per-call path
      never copies the single largest array.
    * Optionally casts Wp to bf16 (f32 accumulation stays in-kernel) to halve the
      dominant HBM stream and hit the fast MXU path on v6e/v7x.
    """
    wp, bp = params["wp"], params["bp"]
    V = wp.shape[1]
    Vp = -(-V // 128) * 128
    if Vp != V:
        wp = jnp.pad(wp, ((0, 0), (0, Vp - V)))
        bp = jnp.pad(bp, ((0, 0), (0, Vp - V)))
    prepared = dict(params)
    prepared["wp"] = wp.astype(projection_dtype)
    prepared["bp"] = bp.astype(jnp.float32)     # bias stays f32 (added post-accumulation)
    prepared["vocab_size"] = V                  # un-padded vocab size
    return prepared


def deep_bottleneck_forward(unprojected_outs, params, *, tm=512, tn=1024):
    """Pallas implementation of DeepBottleneckStrategy.forward.

    unprojected_outs: list of [B, S, D] arrays (all decoders with equal D).
    params: dict from prepare_params() (padded/cast Wp, stacked W1).
    Returns (logits [B, S, V] float32, possible_translation_tokens=None).
    """
    n = len(unprojected_outs)
    B, S, D = unprojected_outs[0].shape
    assert all(u.shape == (B, S, D) for u in unprojected_outs), \
        "per-system layout assumes equal out_embed_dims"
    M = B * S

    w1, b1, w2, b2 = params["w1"], params["b1"], params["w2"], params["b2"]
    wp, bp = params["wp"], params["bp"]
    dim = w1.shape[2]
    Vp = wp.shape[1]                     # padded (multiple of 128) by prepare_params
    V = params.get("vocab_size", Vp)
    assert Vp % 128 == 0, "call prepare_params() first"

    # --- tile sizing ---
    # Row tile: as large as possible (amortizes Wp re-streaming); multiple of 8,
    # and aligned to 256 (full MXU pass on v6e/v7x) once it is >= 256.
    tm = max(8, min(tm, M))
    tm = -(-tm // 8) * 8
    if tm >= 256:
        tm = (tm // 256) * 256
    Mp = -(-M // tm) * tm

    # Vocab tile: multiple of 128 that divides the padded vocab (no partial tiles,
    # no per-call weight padding).
    tn = max(128, min(-(-tn // 128) * 128, Vp))
    while Vp % tn != 0:
        tn -= 128

    # Pad only the (cheap) row dimension of the activations per call.
    xs = [u.reshape(M, D) for u in unprojected_outs]
    if Mp != M:
        xs = [jnp.pad(x, ((0, Mp - M), (0, 0))) for x in xs]

    grid = (Mp // tm, Vp // tn)
    kernel = functools.partial(_deep_bottleneck_kernel, n_systems=n)

    itemsize = lambda a: a.dtype.itemsize
    # Double-buffered VMEM footprint of all blocks + scratch, used both as a sanity
    # budget and for vmem_limit_bytes (clamped to 64 MiB: legal on every generation).
    block_bytes = (
        n * tm * D * 4 * 2
        + w1.size * itemsize(w1) * 2 + b1.size * itemsize(b1) * 2
        + w2.size * itemsize(w2) * 2 + b2.size * itemsize(b2) * 2
        + dim * tn * itemsize(wp) * 2 + tn * 4 * 2
        + tm * tn * 4 * 2
        + tm * dim * itemsize(wp)
    )
    vmem_limit = int(max(32 << 20, min(64 << 20, block_bytes * 5 // 4 + (2 << 20))))

    # Cost estimate with the real Wp traffic: Wp/bp are re-read once per row tile.
    n_row_tiles = Mp // tm
    flops = 2 * Mp * (n * D * dim + dim * dim) + 2 * Mp * dim * Vp
    bytes_accessed = (
        n * Mp * D * 4
        + w1.size * itemsize(w1) + b1.size * itemsize(b1)
        + w2.size * itemsize(w2) + b2.size * itemsize(b2)
        + n_row_tiles * (wp.size * itemsize(wp) + bp.size * itemsize(bp))
        + Mp * Vp * 4
    )

    in_specs = (
        # per-system decoder outputs: row-tile only, constant along v
        [pl.BlockSpec((tm, D), lambda i, v: (i, 0)) for _ in range(n)]
        + [
            pl.BlockSpec((n, D, dim), lambda i, v: (0, 0, 0)),   # W1 (stacked per system)
            pl.BlockSpec((1, dim), lambda i, v: (0, 0)),         # b1
            pl.BlockSpec((dim, dim), lambda i, v: (0, 0)),       # W2
            pl.BlockSpec((1, dim), lambda i, v: (0, 0)),         # b2
            pl.BlockSpec((dim, tn), lambda i, v: (0, v)),        # Wp tile
            pl.BlockSpec((1, tn), lambda i, v: (0, v)),          # bp tile
        ]
    )

    out = pl.pallas_call(
        kernel,
        out_shape=jax.ShapeDtypeStruct((Mp, Vp), jnp.float32),
        grid_spec=pltpu.PrefetchScalarGridSpec(
            num_scalar_prefetch=0,
            grid=grid,
            in_specs=in_specs,
            out_specs=pl.BlockSpec((tm, tn), lambda i, v: (i, v)),
            # z cache lives in the projection-matmul input dtype (bf16 when Wp is bf16).
            scratch_shapes=[pltpu.VMEM((tm, dim), wp.dtype)],
        ),
        compiler_params=pltpu.CompilerParams(
            # vocab axis must stay the inner sequential axis (z scratch is filled at
            # v==0 and reused); row axis is parallel for megacore sharding.
            dimension_semantics=("parallel", "arbitrary"),
            vmem_limit_bytes=vmem_limit,
        ),
        cost_estimate=pl.CostEstimate(flops=flops, transcendentals=0,
                                      bytes_accessed=bytes_accessed),
    )(*xs, w1, b1, w2, b2, wp, bp)

    if Mp != M or Vp != V:
        out = out[:M, :V]
    logits = out.reshape(B, S, V)
    return logits, None


def _reference_forward(unprojected_outs, params):
    """Pure-JAX reference matching the PyTorch module semantics (f32 end-to-end)."""
    x = jnp.concatenate(unprojected_outs, axis=2)                 # [B, S, n*D]
    n, D, dim = params["w1"].shape
    w1_flat = params["w1"].reshape(n * D, dim)                    # concat order == per-system order
    h = jnp.maximum(x @ w1_flat + params["b1"][0], 0.0)
    z = h @ params["w2"] + params["b2"][0]
    return z @ params["wp"] + params["bp"][0]


def init_params(key, n_systems, embed_dim, vocab_size):
    """Deterministic synthetic parameter init (PyTorch-Linear-style uniform).

    bottleneck = Linear(n*D -> D) -> ReLU -> Linear(D -> D); projection D -> V.
    """
    ks = jax.random.split(key, 6)

    def lin(kw, fan_in, shape):
        bound = 1.0 / np.sqrt(fan_in)
        return jax.random.uniform(kw, shape, jnp.float32, -bound, bound)

    nD = n_systems * embed_dim
    dim = embed_dim
    return {
        "w1": lin(ks[0], nD, (n_systems, embed_dim, dim)),   # per-system slices of the concat weight
        "b1": lin(ks[1], nD, (1, dim)),
        "w2": lin(ks[2], dim, (dim, dim)),
        "b2": lin(ks[3], dim, (1, dim)),
        "wp": lin(ks[4], dim, (dim, vocab_size)),
        "bp": lin(ks[5], dim, (1, vocab_size)),
    }


if __name__ == "__main__":
    B, S, D = 2, 8, 32          # batch, seq_len, out_embed_dim (all decoders equal)
    N_SYSTEMS = 2               # number of decoders

    key = jax.random.PRNGKey(0)
    k_in, k_p1, k_p2 = jax.random.split(key, 3)
    in_keys = jax.random.split(k_in, N_SYSTEMS)
    unprojected_outs = [
        jax.random.normal(in_keys[i], (B, S, D), jnp.float32)
        for i in range(N_SYSTEMS)
    ]

    # --- Test 1: f32 projection, vocab divisible by the tile (2 vocab tiles) ---
    V1 = 2048
    params1 = init_params(k_p1, N_SYSTEMS, D, V1)
    prep1 = prepare_params(params1, projection_dtype=jnp.float32)
    logits1, ptt1 = deep_bottleneck_forward(unprojected_outs, prep1, tm=512, tn=1024)
    logits1 = jax.block_until_ready(logits1)
    ref1 = _reference_forward(unprojected_outs, params1)
    np.testing.assert_allclose(np.asarray(logits1), np.asarray(ref1),
                               rtol=1e-4, atol=1e-4)
    assert logits1.shape == (B, S, V1)
    assert ptt1 is None

    # --- Test 2: bf16 Wp (halved HBM stream, fast MXU path), non-lane-multiple vocab,
    # multiple row tiles (tm=8) to exercise the z-cache + row/vocab padding paths. ---
    V2 = 1000
    params2 = init_params(k_p2, N_SYSTEMS, D, V2)
    prep2 = prepare_params(params2, projection_dtype=jnp.bfloat16)
    logits2, ptt2 = deep_bottleneck_forward(unprojected_outs, prep2, tm=8, tn=256)
    logits2 = jax.block_until_ready(logits2)
    ref2 = _reference_forward(unprojected_outs, params2)
    np.testing.assert_allclose(np.asarray(logits2), np.asarray(ref2),
                               rtol=3e-2, atol=3e-2)
    assert logits2.shape == (B, S, V2)
    assert ptt2 is None

    print("KERNEL_OK")
</pallas_src>

<mosaic_0001>
module attributes {stable_mosaic.version = 11 : i64} {
  func.func @_deep_bottleneck_kernel(%arg0: i32, %arg1: i32, %arg2: memref<16x32xf32, #tpu.memory_space<vmem>>, %arg3: memref<16x32xf32, #tpu.memory_space<vmem>>, %arg4: memref<2x32x32xf32, #tpu.memory_space<vmem>>, %arg5: memref<1x32xf32, #tpu.memory_space<vmem>>, %arg6: memref<32x32xf32, #tpu.memory_space<vmem>>, %arg7: memref<1x32xf32, #tpu.memory_space<vmem>>, %arg8: memref<32x1024xf32, #tpu.memory_space<vmem>>, %arg9: memref<1x1024xf32, #tpu.memory_space<vmem>>, %arg10: memref<16x1024xf32, #tpu.memory_space<vmem>>, %arg11: memref<16x32xf32, #tpu.memory_space<vmem>>) attributes {dimension_semantics = [#tpu.dimension_semantics<parallel>, #tpu.dimension_semantics<arbitrary>], iteration_bounds = array<i64: 1, 2>, scalar_prefetch = 0 : i64, scratch_operands = 1 : i64, tpu.core_type = #tpu.core_type<tc>, window_params = [{transform_indices = @transform_0, window_bounds = array<i64: 16, 32>}, {transform_indices = @transform_1, window_bounds = array<i64: 16, 32>}, {pipeline_mode = #tpu.pipeline_mode<synchronous>, transform_indices = @transform_2, window_bounds = array<i64: 2, 32, 32>}, {pipeline_mode = #tpu.pipeline_mode<synchronous>, transform_indices = @transform_3, window_bounds = array<i64: 1, 32>}, {pipeline_mode = #tpu.pipeline_mode<synchronous>, transform_indices = @transform_4, window_bounds = array<i64: 32, 32>}, {pipeline_mode = #tpu.pipeline_mode<synchronous>, transform_indices = @transform_5, window_bounds = array<i64: 1, 32>}, {transform_indices = @transform_6, window_bounds = array<i64: 32, 1024>}, {transform_indices = @transform_7, window_bounds = array<i64: 1, 1024>}, {transform_indices = @transform_8, window_bounds = array<i64: 16, 1024>}]} {
    %c0_i32 = arith.constant 0 : i32
    %0 = arith.cmpi eq, %arg1, %c0_i32 : i32
    %1 = arith.extui %0 : i1 to i32
    %c0_i32_0 = arith.constant 0 : i32
    %2 = arith.cmpi ne, %1, %c0_i32_0 : i32
    scf.if %2 {
      %c0_8 = arith.constant 0 : index
      %c0_9 = arith.constant 0 : index
      %10 = vector.load %arg2[%c0_8, %c0_9] : memref<16x32xf32, #tpu.memory_space<vmem>>, vector<16x32xf32>
      %c0_10 = arith.constant 0 : index
      %c0_11 = arith.constant 0 : index
      %c0_12 = arith.constant 0 : index
      %11 = vector.load %arg4[%c0_10, %c0_11, %c0_12] : memref<2x32x32xf32, #tpu.memory_space<vmem>>, vector<1x32x32xf32>
      %12 = vector.shape_cast %11 : vector<1x32x32xf32> to vector<32x32xf32>
      %cst_13 = arith.constant dense<0.000000e+00> : vector<16x32xf32>
      %13 = tpu.matmul %10, %12, %cst_13 {dimension_numbers = #tpu.dot_dimension_numbers<[1], [0], [0], [1], [0, 0, 1, 1], [], []>} : vector<16x32xf32>, vector<32x32xf32>, vector<16x32xf32> -> vector<16x32xf32>
      %c0_14 = arith.constant 0 : index
      %c0_15 = arith.constant 0 : index
      %14 = vector.load %arg3[%c0_14, %c0_15] : memref<16x32xf32, #tpu.memory_space<vmem>>, vector<16x32xf32>
      %c1 = arith.constant 1 : index
      %c0_16 = arith.constant 0 : index
      %c0_17 = arith.constant 0 : index
      %15 = vector.load %arg4[%c1, %c0_16, %c0_17] : memref<2x32x32xf32, #tpu.memory_space<vmem>>, vector<1x32x32xf32>
      %16 = vector.shape_cast %15 : vector<1x32x32xf32> to vector<32x32xf32>
      %cst_18 = arith.constant dense<0.000000e+00> : vector<16x32xf32>
      %17 = tpu.matmul %14, %16, %cst_18 {dimension_numbers = #tpu.dot_dimension_numbers<[1], [0], [0], [1], [0, 0, 1, 1], [], []>} : vector<16x32xf32>, vector<32x32xf32>, vector<16x32xf32> -> vector<16x32xf32>
      %18 = arith.addf %13, %17 : vector<16x32xf32>
      %c0_19 = arith.constant 0 : index
      %c0_20 = arith.constant 0 : index
      %19 = vector.load %arg5[%c0_19, %c0_20] : memref<1x32xf32, #tpu.memory_space<vmem>>, vector<1x32xf32>
      %20 = vector.broadcast %19 : vector<1x32xf32> to vector<16x32xf32>
      %21 = arith.addf %18, %20 : vector<16x32xf32>
      %cst_21 = arith.constant 0.000000e+00 : f32
      %22 = vector.broadcast %cst_21 : f32 to vector<16x32xf32>
      %23 = arith.maximumf %21, %22 : vector<16x32xf32>
      %c0_22 = arith.constant 0 : index
      %c0_23 = arith.constant 0 : index
      %24 = vector.load %arg6[%c0_22, %c0_23] : memref<32x32xf32, #tpu.memory_space<vmem>>, vector<32x32xf32>
      %cst_24 = arith.constant dense<0.000000e+00> : vector<16x32xf32>
      %25 = tpu.matmul %23, %24, %cst_24 {dimension_numbers = #tpu.dot_dimension_numbers<[1], [0], [0], [1], [0, 0, 1, 1], [], []>} : vector<16x32xf32>, vector<32x32xf32>, vector<16x32xf32> -> vector<16x32xf32>
      %c0_25 = arith.constant 0 : index
      %c0_26 = arith.constant 0 : index
      %26 = vector.load %arg7[%c0_25, %c0_26] : memref<1x32xf32, #tpu.memory_space<vmem>>, vector<1x32xf32>
      %27 = vector.broadcast %26 : vector<1x32xf32> to vector<16x32xf32>
      %28 = arith.addf %25, %27 : vector<16x32xf32>
      %c0_27 = arith.constant 0 : index
      %c0_28 = arith.constant 0 : index
      %29 = vector.load %arg11[%c0_27, %c0_28] : memref<16x32xf32, #tpu.memory_space<vmem>>, vector<16x32xf32>
      tpu.vector_store %arg11[%c0_27, %c0_28], %28 {strides = array<i32>} : memref<16x32xf32, #tpu.memory_space<vmem>>, vector<16x32xf32>,
    } else {
    }
    %c0 = arith.constant 0 : index
    %c0_1 = arith.constant 0 : index
    %3 = vector.load %arg11[%c0, %c0_1] : memref<16x32xf32, #tpu.memory_space<vmem>>, vector<16x32xf32>
    %c0_2 = arith.constant 0 : index
    %c0_3 = arith.constant 0 : index
    %4 = vector.load %arg8[%c0_2, %c0_3] : memref<32x1024xf32, #tpu.memory_space<vmem>>, vector<32x1024xf32>
    %cst = arith.constant dense<0.000000e+00> : vector<16x1024xf32>
    %5 = tpu.matmul %3, %4, %cst {dimension_numbers = #tpu.dot_dimension_numbers<[1], [0], [0], [1], [0, 0, 1, 1], [], []>} : vector<16x32xf32>, vector<32x1024xf32>, vector<16x1024xf32> -> vector<16x1024xf32>
    %c0_4 = arith.constant 0 : index
    %c0_5 = arith.constant 0 : index
    %6 = vector.load %arg9[%c0_4, %c0_5] : memref<1x1024xf32, #tpu.memory_space<vmem>>, vector<1x1024xf32>
    %7 = vector.broadcast %6 : vector<1x1024xf32> to vector<16x1024xf32>
    %8 = arith.addf %5, %7 : vector<16x1024xf32>
    %c0_6 = arith.constant 0 : index
    %c0_7 = arith.constant 0 : index
    %9 = vector.load %arg10[%c0_6, %c0_7] : memref<16x1024xf32, #tpu.memory_space<vmem>>, vector<16x1024xf32>
    tpu.vector_store %arg10[%c0_6, %c0_7], %8 {strides = array<i32>} : memref<16x1024xf32, #tpu.memory_space<vmem>>, vector<16x1024xf32>,
    return
  }
  func.func @transform_0(%arg0: i32, %arg1: i32) -> (i32, i32) {
    %c0_i32 = arith.constant 0 : i32
    %c0_i32_0 = arith.constant 0 : i32
    return %arg0, %c0_i32 : i32, i32
  }
  func.func @transform_1(%arg0: i32, %arg1: i32) -> (i32, i32) {
    %c0_i32 = arith.constant 0 : i32
    %c0_i32_0 = arith.constant 0 : i32
    return %arg0, %c0_i32 : i32, i32
  }
  func.func @transform_2(%arg0: i32, %arg1: i32) -> (i32, i32, i32) {
    %c0_i32 = arith.constant 0 : i32
    %c0_i32_0 = arith.constant 0 : i32
    %c0_i32_1 = arith.constant 0 : i32
    %c0_i32_2 = arith.constant 0 : i32
    return %c0_i32, %c0_i32_0, %c0_i32_1 : i32, i32, i32
  }
  func.func @transform_3(%arg0: i32, %arg1: i32) -> (i32, i32) {
    %c0_i32 = arith.constant 0 : i32
    %c0_i32_0 = arith.constant 0 : i32
    %c0_i32_1 = arith.constant 0 : i32
    return %c0_i32, %c0_i32_0 : i32, i32
  }
  func.func @transform_4(%arg0: i32, %arg1: i32) -> (i32, i32) {
    %c0_i32 = arith.constant 0 : i32
    %c0_i32_0 = arith.constant 0 : i32
    %c0_i32_1 = arith.constant 0 : i32
    return %c0_i32, %c0_i32_0 : i32, i32
  }
  func.func @transform_5(%arg0: i32, %arg1: i32) -> (i32, i32) {
    %c0_i32 = arith.constant 0 : i32
    %c0_i32_0 = arith.constant 0 : i32
    %c0_i32_1 = arith.constant 0 : i32
    return %c0_i32, %c0_i32_0 : i32, i32
  }
  func.func @transform_6(%arg0: i32, %arg1: i32) -> (i32, i32) {
    %c0_i32 = arith.constant 0 : i32
    %c0_i32_0 = arith.constant 0 : i32
    return %c0_i32, %arg1 : i32, i32
  }
  func.func @transform_7(%arg0: i32, %arg1: i32) -> (i32, i32) {
    %c0_i32 = arith.constant 0 : i32
    %c0_i32_0 = arith.constant 0 : i32
    return %c0_i32, %arg1 : i32, i32
  }
  func.func @transform_8(%arg0: i32, %arg1: i32) -> (i32, i32) {
    %c0_i32 = arith.constant 0 : i32
    return %arg0, %arg1 : i32, i32
  }
}

</mosaic_0001>

<llo_original>
// kernel: tpu_custom_call.1
$region0: #{tpu_custom_call.1}
  #allocation0 [shape = 'u32[]', space=smem, size = 0x4, offset = 0x4, fixed_abs, tag = 'smem constant byte address 0x4 - core index']
  #allocation1 [shape = 'u32[72,128]{1,0:T(1,128)}', space=vmem, size = 0x9000, scoped, tag = 'internal scratch']
  #allocation2 [shape = 'f32[16,32]{1,0:T(8,128)}', space=vmem, size = 0x2000, scoped, tag = 'scratch operand']
  %s0 = inlined_call_operand.hbm [shape: f32[16,32], index: 0, kind: input, shape index: {}]
  %s1 = inlined_call_operand.hbm [shape: f32[16,32], index: 1, kind: input, shape index: {}]
  %s2 = inlined_call_operand.hbm [shape: f32[2,32,32], index: 2, kind: input, shape index: {}]
  %s3 = inlined_call_operand.vmem [shape: f32[1,32], index: 3, kind: input, shape index: {}]
  %s4 = inlined_call_operand.hbm [shape: f32[32,32], index: 4, kind: input, shape index: {}]
  %s5 = inlined_call_operand.vmem [shape: f32[1,32], index: 5, kind: input, shape index: {}]
  %s6 = inlined_call_operand.hbm [shape: f32[32,2048], index: 6, kind: input, shape index: {}]
  %s7 = inlined_call_operand.hbm [shape: f32[1,2048], index: 7, kind: input, shape index: {}]
  %s8 = inlined_call_operand.hbm [shape: f32[16,2048], index: 8, kind: output, shape index: {}]
  %s9 = sld [smem:[#allocation0]]
  $region93: #{tpu_custom_call.1} parent=0
    _
  %s11 = ssub.s32 1, %s9
  %s12 = scalar_select 0, %s11, %s9
  $region1: #{tpu_custom_call.1} parent=0
    #allocation3 [shape = 'u8[8192]{0}', space=vmem, size = 0x2000, scoped, tag = 'input window, operand 0, single buffered']
    #allocation4 [shape = 's32[2]{0}', space=sflag, size = 0x8, scoped, tag = 'scoped memory for tpu_custom_call.1']
    #allocation5 [shape = 's32[2]{0}', space=sflag, size = 0x8, scoped, tag = 'scoped memory for tpu_custom_call.1']
    #allocation6 [shape = 'u8[8192]{0}', space=vmem, size = 0x2000, scoped, tag = 'input window, operand 1, single buffered']
    #allocation7 [shape = 's32[1]{0}', space=sflag, size = 0x4, scoped, tag = 'scoped memory for tpu_custom_call.1']
    #allocation8 [shape = 'u8[32768]{0}', space=vmem, size = 0x8000, scoped, tag = 'input window, operand 2, single buffered']
    #allocation9 [shape = 'u8[16384]{0}', space=vmem, size = 0x4000, scoped, tag = 'input window, operand 4, single buffered']
    #allocation10 [shape = 's32[1]{0}', space=sflag, size = 0x4, scoped, tag = 'scoped memory for tpu_custom_call.1']
    #allocation11 [shape = 'u8[262144]{0}', space=vmem, size = 0x40000, scoped, tag = 'input window, operand 6']
    #allocation12 [shape = 'u8[8192]{0}', space=vmem, size = 0x2000, scoped, tag = 'input window, operand 7']
    #allocation13 [shape = 'u8[131072]{0}', space=vmem, size = 0x20000, scoped, tag = 'output window, operand 0']
    %13 = vsyncpa [#allocation4], 0
    %14 = vsyncpa [#allocation7], 0
    %15 = vsyncpa [#allocation10], 0
    %16 = vsyncpa [#allocation5], 0
    %s17 = scalar_lea.sflag [#allocation5], 1
    %18 = vsyncpa %s17, 0
    loop: start=0, step=1, limit=4
    $region2: #{tpu_custom_call.1} parent=1 // loop_pre_header
      _
    $region3: #{tpu_custom_call.1} parent=1 // loop_header
      %s20 = sphi 0, %s24
      %p21 = scmp.ge.s32.totalorder %s20, 4
      %s27 = sphi 0, %s39
      %s28 = sphi 0, %s35
      %s29 = sphi 0, %s27
      %s30 = sphi 0, %s28
      %s31 = sphi 0, %s29
      %s32 = sphi 0, %s30
      %s42 = sphi 0, %s44
      %s45 = sphi 0, %s42
      %s46 = sphi 0, %s45
      %s62 = sphi 0, %s46
      %s68 = sphi 0, %s70
      %s71 = sphi 0, %s68
      %s72 = sphi 0, %s71
      %s88 = sphi 0, %s72
      %s92 = sphi 0, %s92
      %s94 = sphi 0, %s92
      %s95 = sphi 0, %s94
      %s109 = sphi 0, %s95
      %s113 = sphi 0, %s113
      %s115 = sphi 0, %s113
      %s116 = sphi 0, %s115
      %s130 = sphi 0, %s116
      %s134 = sphi 0, %s134
      %s136 = sphi 0, %s134
      %s137 = sphi 0, %s136
      %s151 = sphi 0, %s137
      %s155 = sphi 0, %s155
      %s157 = sphi 0, %s155
      %s158 = sphi 0, %s157
      %s172 = sphi 0, %s158
      %s178 = sphi 0, %s180
      %s181 = sphi 0, %s178
      %s182 = sphi 0, %s181
      %s198 = sphi 0, %s182
      %s204 = sphi 0, %s206
      %s207 = sphi 0, %s204
      %s208 = sphi 0, %s207
      %s224 = sphi 0, %s208
      %s232 = sphi 0, %s234
      %s235 = sphi 0, %s232
      %s236 = sphi 0, %s235
      %s252 = sphi 0, %s236
    $region4: #{tpu_custom_call.1} parent=1 // loop_header_branch
      %23 = sbr.rel (%p21) target = $region8
    $region5: #{tpu_custom_call.1} parent=1 // loop_body
      %s25 = ssub.s32 %s20, 1
      %s26 = ssub.s32 %s20, 2
      %s33 = sadd.s32 1, %s28
      %p34 = scmp.ge.s32.totalorder %s33, 2
      %s35 = scalar_select %p34, 0, %s33
      %s36 = sadd.s32 1, %s27
      %s37 = scalar_select %p34, %s36, %s27
      %p38 = scmp.ge.s32.totalorder %s37, 1
      %s39 = scalar_select %p38, 0, %s37
      %s40 = ssub.s32 %s27, %s39
      %p41 = scmp.eq.s32.totalorder %s40, 0
      %s43 = sadd.s32 %s42, 1
      %s44 = scalar_select %p41, %s42, %s43
      %p47 = pneg %p41
      %p48 = scmp.eq.s32.totalorder %s20, 1
      %p49 = por %p47, %p48
      %p50 = scmp.ne.s32.totalorder %s42, %s45
      %p51 = scmp.eq.s32.totalorder %s20, 0
      %p52 = por %p50, %p51
      %p53 = scmp.ne.s32.totalorder %s42, %s45
      %p54 = scmp.eq.s32.totalorder %s25, 1
      %p55 = por %p53, %p54
      %p56 = scmp.ne.s32.totalorder %s45, %s46
      %p57 = scmp.eq.s32.totalorder %s25, 0
      %p58 = por %p56, %p57
      %p59 = scmp.ne.s32.totalorder %s45, %s46
      %p60 = scmp.eq.s32.totalorder %s26, 1
      %p61 = por %p59, %p60
      %p63 = scmp.ne.s32.totalorder %s46, %s62
      %p64 = scmp.eq.s32.totalorder %s26, 0
      %p65 = por %p63, %p64
      %s66 = ssub.s32 %s27, %s39
      %p67 = scmp.eq.s32.totalorder %s66, 0
      %s69 = sadd.s32 %s68, 1
      %s70 = scalar_select %p67, %s68, %s69
      %p73 = pneg %p67
      %p74 = scmp.eq.s32.totalorder %s20, 1
      %p75 = por %p73, %p74
      %p76 = scmp.ne.s32.totalorder %s68, %s71
      %p77 = scmp.eq.s32.totalorder %s20, 0
      %p78 = por %p76, %p77
      %p79 = scmp.ne.s32.totalorder %s68, %s71
      %p80 = scmp.eq.s32.totalorder %s25, 1
      %p81 = por %p79, %p80
      %p82 = scmp.ne.s32.totalorder %s71, %s72
      %p83 = scmp.eq.s32.totalorder %s25, 0
      %p84 = por %p82, %p83
      %p85 = scmp.ne.s32.totalorder %s71, %s72
      %p86 = scmp.eq.s32.totalorder %s26, 1
      %p87 = por %p85, %p86
      %p89 = scmp.ne.s32.totalorder %s72, %s88
      %p90 = scmp.eq.s32.totalorder %s26, 0
      %p91 = por %p89, %p90
      %s93 = sadd.s32 %s92, 1
      %p96 = scmp.eq.s32.totalorder %s20, 1
      %p97 = scmp.ne.s32.totalorder %s92, %s94
      %p98 = scmp.eq.s32.totalorder %s20, 0
      %p99 = por %p97, %p98
      %p100 = scmp.ne.s32.totalorder %s92, %s94
      %p101 = scmp.eq.s32.totalorder %s25, 1
      %p102 = por %p100, %p101
      %p103 = scmp.ne.s32.totalorder %s94, %s95
      %p104 = scmp.eq.s32.totalorder %s25, 0
      %p105 = por %p103, %p104
      %p106 = scmp.ne.s32.totalorder %s94, %s95
      %p107 = scmp.eq.s32.totalorder %s26, 1
      %p108 = por %p106, %p107
      %p110 = scmp.ne.s32.totalorder %s95, %s109
      %p111 = scmp.eq.s32.totalorder %s26, 0
      %p112 = por %p110, %p111
      %s114 = sadd.s32 %s113, 1
      %p117 = scmp.eq.s32.totalorder %s20, 1
      %p118 = scmp.ne.s32.totalorder %s113, %s115
      %p119 = scmp.eq.s32.totalorder %s20, 0
      %p120 = por %p118, %p119
      %p121 = scmp.ne.s32.totalorder %s113, %s115
      %p122 = scmp.eq.s32.totalorder %s25, 1
      %p123 = por %p121, %p122
      %p124 = scmp.ne.s32.totalorder %s115, %s116
      %p125 = scmp.eq.s32.totalorder %s25, 0
      %p126 = por %p124, %p125
      %p127 = scmp.ne.s32.totalorder %s115, %s116
      %p128 = scmp.eq.s32.totalorder %s26, 1
      %p129 = por %p127, %p128
      %p131 = scmp.ne.s32.totalorder %s116, %s130
      %p132 = scmp.eq.s32.totalorder %s26, 0
      %p133 = por %p131, %p132
      %s135 = sadd.s32 %s134, 1
      %p138 = scmp.eq.s32.totalorder %s20, 1
      %p139 = scmp.ne.s32.totalorder %s134, %s136
      %p140 = scmp.eq.s32.totalorder %s20, 0
      %p141 = por %p139, %p140
      %p142 = scmp.ne.s32.totalorder %s134, %s136
      %p143 = scmp.eq.s32.totalorder %s25, 1
      %p144 = por %p142, %p143
      %p145 = scmp.ne.s32.totalorder %s136, %s137
      %p146 = scmp.eq.s32.totalorder %s25, 0
      %p147 = por %p145, %p146
      %p148 = scmp.ne.s32.totalorder %s136, %s137
      %p149 = scmp.eq.s32.totalorder %s26, 1
      %p150 = por %p148, %p149
      %p152 = scmp.ne.s32.totalorder %s137, %s151
      %p153 = scmp.eq.s32.totalorder %s26, 0
      %p154 = por %p152, %p153
      %s156 = sadd.s32 %s155, 1
      %p159 = scmp.eq.s32.totalorder %s20, 1
      %p160 = scmp.ne.s32.totalorder %s155, %s157
      %p161 = scmp.eq.s32.totalorder %s20, 0
      %p162 = por %p160, %p161
      %p163 = scmp.ne.s32.totalorder %s155, %s157
      %p164 = scmp.eq.s32.totalorder %s25, 1
      %p165 = por %p163, %p164
      %p166 = scmp.ne.s32.totalorder %s157, %s158
      %p167 = scmp.eq.s32.totalorder %s25, 0
      %p168 = por %p166, %p167
      %p169 = scmp.ne.s32.totalorder %s157, %s158
      %p170 = scmp.eq.s32.totalorder %s26, 1
      %p171 = por %p169, %p170
      %p173 = scmp.ne.s32.totalorder %s158, %s172
      %p174 = scmp.eq.s32.totalorder %s26, 0
      %p175 = por %p173, %p174
      %s176 = ssub.s32 %s28, %s35
      %p177 = scmp.eq.s32.totalorder %s176, 0
      %s179 = sadd.s32 %s178, 1
      %s180 = scalar_select %p177, %s178, %s179
      %p183 = pneg %p177
      %p184 = scmp.eq.s32.totalorder %s20, 1
      %p185 = por %p183, %p184
      %p186 = scmp.ne.s32.totalorder %s178, %s181
      %p187 = scmp.eq.s32.totalorder %s20, 0
      %p188 = por %p186, %p187
      %p189 = scmp.ne.s32.totalorder %s178, %s181
      %p190 = scmp.eq.s32.totalorder %s25, 1
      %p191 = por %p189, %p190
      %p192 = scmp.ne.s32.totalorder %s181, %s182
      %p193 = scmp.eq.s32.totalorder %s25, 0
      %p194 = por %p192, %p193
      %p195 = scmp.ne.s32.totalorder %s181, %s182
      %p196 = scmp.eq.s32.totalorder %s26, 1
      %p197 = por %p195, %p196
      %p199 = scmp.ne.s32.totalorder %s182, %s198
      %p200 = scmp.eq.s32.totalorder %s26, 0
      %p201 = por %p199, %p200
      %s202 = ssub.s32 %s28, %s35
      %p203 = scmp.eq.s32.totalorder %s202, 0
      %s205 = sadd.s32 %s204, 1
      %s206 = scalar_select %p203, %s204, %s205
      %p209 = pneg %p203
      %p210 = scmp.eq.s32.totalorder %s20, 1
      %p211 = por %p209, %p210
      %p212 = scmp.ne.s32.totalorder %s204, %s207
      %p213 = scmp.eq.s32.totalorder %s20, 0
      %p214 = por %p212, %p213
      %p215 = scmp.ne.s32.totalorder %s204, %s207
      %p216 = scmp.eq.s32.totalorder %s25, 1
      %p217 = por %p215, %p216
      %p218 = scmp.ne.s32.totalorder %s207, %s208
      %p219 = scmp.eq.s32.totalorder %s25, 0
      %p220 = por %p218, %p219
      %p221 = scmp.ne.s32.totalorder %s207, %s208
      %p222 = scmp.eq.s32.totalorder %s26, 1
      %p223 = por %p221, %p222
      %p225 = scmp.ne.s32.totalorder %s208, %s224
      %p226 = scmp.eq.s32.totalorder %s26, 0
      %p227 = por %p225, %p226
      %s228 = ssub.s32 %s27, %s39
      %s229 = ssub.s32 %s28, %s35
      %s230 = sor.u32 %s228, %s229
      %p231 = scmp.eq.s32.totalorder %s230, 0
      %s233 = sadd.s32 %s232, 1
      %s234 = scalar_select %p231, %s232, %s233
      %p237 = pneg %p231
      %p238 = scmp.eq.s32.totalorder %s20, 1
      %p239 = por %p237, %p238
      %p240 = scmp.ne.s32.totalorder %s232, %s235
      %p241 = scmp.eq.s32.totalorder %s20, 0
      %p242 = por %p240, %p241
      %p243 = scmp.ne.s32.totalorder %s232, %s235
      %p244 = scmp.eq.s32.totalorder %s25, 1
      %p245 = por %p243, %p244
      %p246 = scmp.ne.s32.totalorder %s235, %s236
      %p247 = scmp.eq.s32.totalorder %s25, 0
      %p248 = por %p246, %p247
      %p249 = scmp.ne.s32.totalorder %s235, %s236
      %p250 = scmp.eq.s32.totalorder %s26, 1
      %p251 = por %p249, %p250
      %p253 = scmp.ne.s32.totalorder %s236, %s252
      %p254 = scmp.eq.s32.totalorder %s26, 0
      %p255 = por %p253, %p254
      %p256 = scmp.le.s32.totalorder 1, %s20
      %p257 = scmp.lt.s32.totalorder %s20, 3
      %p258 = pnand %p256, %p257
      %p259 = pneg %p258
      // Predicated region
      $region9: #{tpu_custom_call.1} parent=5 // pred_check
        _
      $region10: #{tpu_custom_call.1} parent=5 // pred_check_branch
        %261 = sbr.rel (%p258) target = $region12
      $region11: #{tpu_custom_call.1} parent=5 // pred_region
        %s262 = ssub.s32 %s20, 1
        // Predicated region
        $region13: #{tpu_custom_call.1} parent=11 // pred_check
          %p263 = pneg %p58
        $region14: #{tpu_custom_call.1} parent=11 // pred_check_branch
          %265 = sbr.rel (%p263) target = $region16
        $region15: #{tpu_custom_call.1} parent=11 // pred_region
          %s266 = smul.u32 2, %s29
          %268 = vsyncadd [#allocation4], 0
          %s269 = smul.addr %s266, 8
          %s270 = scalar_lea.hbm %s0, %s269
          %s271 = sshll.u32 %s270, 4
          %s272 = int_to_ptr.hbm [resolvable:$true] %s271
          %s273 = sshll.u32 [#allocation3], 4
          %s274 = int_to_ptr.vmem [resolvable:$true] %s273
          %279 = dma.hbm_to_vmem [thread:$0]  %s272, 256, %s274, [#allocation4], 128, 128, 8
        $region16: #{tpu_custom_call.1} parent=11 // pred_fallthru
          _
        // Predicated region
        $region17: #{tpu_custom_call.1} parent=11 // pred_check
          %p280 = pneg %p84
        $region18: #{tpu_custom_call.1} parent=11 // pred_check_branch
          %282 = sbr.rel (%p280) target = $region20
        $region19: #{tpu_custom_call.1} parent=11 // pred_region
          %s283 = smul.u32 2, %s29
          %285 = vsyncadd [#allocation7], 0
          %s286 = smul.addr %s283, 8
          %s287 = scalar_lea.hbm %s1, %s286
          %s288 = sshll.u32 %s287, 4
          %s289 = int_to_ptr.hbm [resolvable:$true] %s288
          %s290 = sshll.u32 [#allocation6], 4
          %s291 = int_to_ptr.vmem [resolvable:$true] %s290
          %296 = dma.hbm_to_vmem [thread:$0]  %s289, 256, %s291, [#allocation7], 128, 128, 8
        $region20: #{tpu_custom_call.1} parent=11 // pred_fallthru
          _
        // Predicated region
        $region21: #{tpu_custom_call.1} parent=11 // pred_check
          %p297 = pneg %p105
        $region22: #{tpu_custom_call.1} parent=11 // pred_check_branch
          %299 = sbr.rel (%p297) target = $region24
        $region23: #{tpu_custom_call.1} parent=11 // pred_region
          %301 = vsyncadd [#allocation7], 0
          %s302 = sshll.u32 %s2, 4
          %s303 = int_to_ptr.hbm [resolvable:$true] %s302
          %s304 = sshll.u32 [#allocation8], 4
          %s305 = int_to_ptr.vmem [resolvable:$true] %s304
          %310 = dma.hbm_to_vmem [thread:$0]  %s303, 1024, %s305, [#allocation7], 128, 128, 8
        $region24: #{tpu_custom_call.1} parent=11 // pred_fallthru
          _
        // Predicated region
        $region25: #{tpu_custom_call.1} parent=11 // pred_check
          %p311 = pneg %p126
        $region26: #{tpu_custom_call.1} parent=11 // pred_check_branch
          %313 = sbr.rel (%p311) target = $region28
        $region27: #{tpu_custom_call.1} parent=11 // pred_region
          _
        $region28: #{tpu_custom_call.1} parent=11 // pred_fallthru
          _
        // Predicated region
        $region29: #{tpu_custom_call.1} parent=11 // pred_check
          %p314 = pneg %p147
        $region30: #{tpu_custom_call.1} parent=11 // pred_check_branch
          %316 = sbr.rel (%p314) target = $region32
        $region31: #{tpu_custom_call.1} parent=11 // pred_region
          %318 = vsyncadd [#allocation10], 0
          %s319 = sshll.u32 %s4, 4
          %s320 = int_to_ptr.hbm [resolvable:$true] %s319
          %s321 = sshll.u32 [#allocation9], 4
          %s322 = int_to_ptr.vmem [resolvable:$true] %s321
          %327 = dma.hbm_to_vmem [thread:$0]  %s320, 512, %s322, [#allocation10], 128, 128, 8
        $region32: #{tpu_custom_call.1} parent=11 // pred_fallthru
          _
        // Predicated region
        $region33: #{tpu_custom_call.1} parent=11 // pred_check
          %p328 = pneg %p168
        $region34: #{tpu_custom_call.1} parent=11 // pred_check_branch
          %330 = sbr.rel (%p328) target = $region36
        $region35: #{tpu_custom_call.1} parent=11 // pred_region
          _
        $region36: #{tpu_custom_call.1} parent=11 // pred_fallthru
          _
      $region12: #{tpu_custom_call.1} parent=5 // pred_fallthru
        _
      %p331 = scmp.lt.s32.totalorder %s20, 2
      // Predicated region
      $region37: #{tpu_custom_call.1} parent=5 // pred_check
        %p332 = pneg %p331
      $region38: #{tpu_custom_call.1} parent=5 // pred_check_branch
        %334 = sbr.rel (%p332) target = $region40
      $region39: #{tpu_custom_call.1} parent=5 // pred_region
        // Predicated region
        $region41: #{tpu_custom_call.1} parent=39 // pred_check
          %p335 = pneg %p188
        $region42: #{tpu_custom_call.1} parent=39 // pred_check_branch
          %337 = sbr.rel (%p335) target = $region44
        $region43: #{tpu_custom_call.1} parent=39 // pred_region
          %s338 = sand.u32 %s20, 1
          %s339 = scalar_lea.sflag [#allocation4], %s338
          %s340 = sand.u32 %s178, 1
          %s341 = smul.addr %s340, 256
          %s342 = scalar_lea.vmem [#allocation11], %s341
          %s343 = smul.u32 8, %s28
          %345 = vsyncadd %s339, 0
          %s346 = smul.addr %s343, 8
          %s347 = scalar_lea.hbm %s6, %s346
          %s348 = sshll.u32 %s347, 4
          %s349 = int_to_ptr.hbm [resolvable:$true] %s348
          %s350 = sshll.u32 %s342, 4
          %s351 = int_to_ptr.vmem [resolvable:$true] %s350
          %356 = dma.hbm_to_vmem [thread:$0]  %s349, 4096, %s351, %s339, 2048, 1024, 64
        $region44: #{tpu_custom_call.1} parent=39 // pred_fallthru
          _
        // Predicated region
        $region45: #{tpu_custom_call.1} parent=39 // pred_check
          %p357 = pneg %p214
        $region46: #{tpu_custom_call.1} parent=39 // pred_check_branch
          %359 = sbr.rel (%p357) target = $region48
        $region47: #{tpu_custom_call.1} parent=39 // pred_region
          %s360 = sand.u32 %s20, 1
          %s361 = scalar_lea.sflag [#allocation4], %s360
          %s362 = sand.u32 %s204, 1
          %s363 = smul.addr %s362, 8
          %s364 = scalar_lea.vmem [#allocation12], %s363
          %s365 = smul.u32 8, %s28
          %367 = vsyncadd %s361, 0
          %s368 = scalar_lea.hbm %s7, %s365
          %s370 = sshll.u32 %s368, 4
          %s371 = int_to_ptr.hbm [resolvable:$true] %s370
          %s372 = sshll.u32 %s364, 4
          %s373 = int_to_ptr.vmem [resolvable:$true] %s372
          %375 = dma.hbm_to_vmem [thread:$0]  %s371, 128, %s373, %s361
        $region48: #{tpu_custom_call.1} parent=39 // pred_fallthru
          _
      $region40: #{tpu_custom_call.1} parent=5 // pred_fallthru
        _
      %p376 = scmp.le.s32.totalorder 1, %s20
      %p377 = scmp.lt.s32.totalorder %s20, 3
      %p378 = pnand %p376, %p377
      %p379 = pneg %p378
      // Predicated region
      $region49: #{tpu_custom_call.1} parent=5 // pred_check
        _
      $region50: #{tpu_custom_call.1} parent=5 // pred_check_branch
        %381 = sbr.rel (%p378) target = $region52
      $region51: #{tpu_custom_call.1} parent=5 // pred_region
        %s382 = ssub.s32 %s20, 1
        // Predicated region
        $region53: #{tpu_custom_call.1} parent=51 // pred_check
          %p383 = pneg %p58
        $region54: #{tpu_custom_call.1} parent=51 // pred_check_branch
          %385 = sbr.rel (%p383) target = $region56
        $region55: #{tpu_custom_call.1} parent=51 // pred_region
          %387 = dma.done [#allocation4], 256
        $region56: #{tpu_custom_call.1} parent=51 // pred_fallthru
          _
        // Predicated region
        $region57: #{tpu_custom_call.1} parent=51 // pred_check
          %p388 = pneg %p84
        $region58: #{tpu_custom_call.1} parent=51 // pred_check_branch
          %390 = sbr.rel (%p388) target = $region60
        $region59: #{tpu_custom_call.1} parent=51 // pred_region
          %392 = dma.done [#allocation7], 256
        $region60: #{tpu_custom_call.1} parent=51 // pred_fallthru
          _
        // Predicated region
        $region61: #{tpu_custom_call.1} parent=51 // pred_check
          %p393 = pneg %p105
        $region62: #{tpu_custom_call.1} parent=51 // pred_check_branch
          %395 = sbr.rel (%p393) target = $region64
        $region63: #{tpu_custom_call.1} parent=51 // pred_region
          %397 = dma.done [#allocation7], 1024
        $region64: #{tpu_custom_call.1} parent=51 // pred_fallthru
          _
        // Predicated region
        $region65: #{tpu_custom_call.1} parent=51 // pred_check
          %p398 = pneg %p147
        $region66: #{tpu_custom_call.1} parent=51 // pred_check_branch
          %400 = sbr.rel (%p398) target = $region68
        $region67: #{tpu_custom_call.1} parent=51 // pred_region
          %402 = dma.done [#allocation10], 512
        $region68: #{tpu_custom_call.1} parent=51 // pred_fallthru
          _
        %s403 = sand.u32 %s25, 1
        %s404 = scalar_lea.sflag [#allocation4], %s403
        %s405 = sand.u32 %s181, 1
        %s406 = smul.addr %s405, 256
        %s407 = scalar_lea.vmem [#allocation11], %s406
        // Predicated region
        $region69: #{tpu_custom_call.1} parent=51 // pred_check
          %p408 = pneg %p194
        $region70: #{tpu_custom_call.1} parent=51 // pred_check_branch
          %410 = sbr.rel (%p408) target = $region72
        $region71: #{tpu_custom_call.1} parent=51 // pred_region
          %412 = dma.done %s404, 4096
        $region72: #{tpu_custom_call.1} parent=51 // pred_fallthru
          _
        %s413 = sand.u32 %s25, 1
        %s414 = scalar_lea.sflag [#allocation4], %s413
        %s415 = sand.u32 %s207, 1
        %s416 = smul.addr %s415, 8
        %s417 = scalar_lea.vmem [#allocation12], %s416
        // Predicated region
        $region73: #{tpu_custom_call.1} parent=51 // pred_check
          %p418 = pneg %p220
        $region74: #{tpu_custom_call.1} parent=51 // pred_check_branch
          %420 = sbr.rel (%p418) target = $region76
        $region75: #{tpu_custom_call.1} parent=51 // pred_region
          %422 = dma.done %s414, 128
        $region76: #{tpu_custom_call.1} parent=51 // pred_fallthru
          _
        %p423 = pneg %p58
        %p424 = pneg %p55
        %p425 = pneg %p84
        %p426 = pneg %p81
        %p427 = pneg %p105
        %p428 = pneg %p102
        %p429 = pneg %p126
        %p430 = pneg %p123
        %p431 = pneg %p147
        %p432 = pneg %p144
        %p433 = pneg %p168
        %p434 = pneg %p165
        %s435 = sand.u32 %s25, 1
        %s436 = scalar_lea.sflag [#allocation4], %s435
        %s437 = sand.u32 %s181, 1
        %s438 = smul.addr %s437, 256
        %s439 = scalar_lea.vmem [#allocation11], %s438
        %p440 = pneg %p194
        %p441 = pneg %p191
        %s442 = sand.u32 %s25, 1
        %s443 = scalar_lea.sflag [#allocation4], %s442
        %s444 = sand.u32 %s207, 1
        %s445 = smul.addr %s444, 8
        %s446 = scalar_lea.vmem [#allocation12], %s445
        %p447 = pneg %p220
        %p448 = pneg %p217
        %p449 = pneg %p248
        %p450 = pneg %p245
        %s451 = sand.u32 %s235, 1
        %s452 = scalar_lea.sflag [#allocation5], %s451
        %s453 = sand.u32 %s235, 1
        %s454 = smul.addr %s453, 128
        %s455 = scalar_lea.vmem [#allocation13], %s454
        %s456 = smul.u32 2, %s29
        %s457 = smul.u32 2, %s29
        %s458 = smul.u32 8, %s30
        %s459 = smul.u32 8, %s30
        %s460 = smul.u32 2, %s29
        %s461 = smul.u32 8, %s30
        %p462 = scmp.eq.s32.totalorder %s30, 0
        // Predicated region
        $region77: #{tpu_custom_call.1} parent=51 // pred_check
          %p463 = pneg %p462
        $region78: #{tpu_custom_call.1} parent=51 // pred_check_branch
          %465 = sbr.rel (%p463) target = $region80
        $region79: #{tpu_custom_call.1} parent=51 // pred_region
          %v466 = vld [vmem:[#allocation3] sm:$0xff]
          %v467 = vld [vmem:[#allocation3 + $0x8] sm:$0xff]
          %v468 = vld [vmem:[#allocation8] sm:$0xff]
          %v469 = vld [vmem:[#allocation8 + $0x8] sm:$0xff]
          %v470 = vld [vmem:[#allocation8 + $0x10] sm:$0xff]
          %v471 = vld [vmem:[#allocation8 + $0x18] sm:$0xff]
          %v472 = vld [vmem:[#allocation6] sm:$0xff]
          %v473 = vld [vmem:[#allocation6 + $0x8] sm:$0xff]
          %s474 = scalar_lea.vmem [#allocation8], 32
          %v475 = vld [vmem:[%s474] sm:$0xff]
          %v476 = vld [vmem:[%s474 + $0x8] sm:$0xff]
          %v477 = vld [vmem:[%s474 + $0x10] sm:$0xff]
          %v478 = vld [vmem:[%s474 + $0x18] sm:$0xff]
          %vm479 = vcmask 261120
          %v481 = vsel %vm479, %v472, 0
          %v484 = vsel %vm479, %v473, 0
          %486 = vmatpush.msra.mxu0 0.0
          %487 = vmatpush.msra.mxu0 0.0
          %488 = vmatpush.msra.mxu0 0.0
          %489 = vmatpush.msra.mxu0 0.0
          %490 = vmatpush.msra.mxu0 0.0
          %491 = vmatpush.msra.mxu0 0.0
          %492 = vmatpush.msra.mxu0 0.0
          %493 = vmatpush.msra.mxu0 0.0
          %494 = vmatpush.msra.mxu0 0.0
          %495 = vmatpush.msra.mxu0 0.0
          %496 = vmatpush.msra.mxu0 0.0
          %497 = vmatpush.msra.mxu0 0.0
          %498 = vmatpush.msra.mxu0 %v478
          %499 = vmatpush.msra.mxu0 %v477
          %500 = vmatpush.msra.mxu0 %v476
          %501 = vmatpush.msra.mxu0 %v475
          %502 = vmatmul.f32.gmra.mxu0 %v481
          %v503 = vpop.f32.mrf.mxu0
          %v504 = vadd.f32 0.0, %v503
          %505 = vmatmul.f32.gmra.mxu0 %v484
          %v506 = vpop.f32.mrf.mxu0
          %v507 = vadd.f32 0.0, %v506
          %508 = vdwg.mxu0
          %v510 = vsel %vm479, %v466, 0
          %v513 = vsel %vm479, %v467, 0
          %515 = vmatpush.msra.mxu0 0.0
          %516 = vmatpush.msra.mxu0 0.0
          %517 = vmatpush.msra.mxu0 0.0
          %518 = vmatpush.msra.mxu0 0.0
          %519 = vmatpush.msra.mxu0 0.0
          %520 = vmatpush.msra.mxu0 0.0
          %521 = vmatpush.msra.mxu0 0.0
          %522 = vmatpush.msra.mxu0 0.0
          %523 = vmatpush.msra.mxu0 0.0
          %524 = vmatpush.msra.mxu0 0.0
          %525 = vmatpush.msra.mxu0 0.0
          %526 = vmatpush.msra.mxu0 0.0
          %527 = vmatpush.msra.mxu0 %v471
          %528 = vmatpush.msra.mxu0 %v470
          %529 = vmatpush.msra.mxu0 %v469
          %530 = vmatpush.msra.mxu0 %v468
          %531 = vmatmul.f32.gmra.mxu0 %v510
          %v532 = vpop.f32.mrf.mxu0
          %v533 = vadd.f32 %v504, %v532
          %534 = vmatmul.f32.gmra.mxu0 %v513
          %v535 = vpop.f32.mrf.mxu0
          %v536 = vadd.f32 %v507, %v535
          %537 = vdwg.mxu0
          %v538 = vld [vmem:[%s3] sm:$0x1]
          %v540 = vperm.slane %v538, 0
          %v542 = vadd.f32 %v533, %v540
          %v543 = vadd.f32 %v536, %v540
          %v544 = vmax.f32 %v542, 0.0
          %v545 = vmax.f32 %v543, 0.0
          %v546 = vld [vmem:[#allocation9] sm:$0xff]
          %v547 = vld [vmem:[#allocation9 + $0x8] sm:$0xff]
          %v548 = vld [vmem:[#allocation9 + $0x10] sm:$0xff]
          %v549 = vld [vmem:[#allocation9 + $0x18] sm:$0xff]
          %v550 = vld [vmem:[%s5] sm:$0x1]
          %v552 = vperm.slane %v550, 0
          %v555 = vsel %vm479, %v544, 0
          %v558 = vsel %vm479, %v545, 0
          %560 = vmatpush.msra.mxu0 0.0
          %561 = vmatpush.msra.mxu0 0.0
          %562 = vmatpush.msra.mxu0 0.0
          %563 = vmatpush.msra.mxu0 0.0
          %564 = vmatpush.msra.mxu0 0.0
          %565 = vmatpush.msra.mxu0 0.0
          %566 = vmatpush.msra.mxu0 0.0
          %567 = vmatpush.msra.mxu0 0.0
          %568 = vmatpush.msra.mxu0 0.0
          %569 = vmatpush.msra.mxu0 0.0
          %570 = vmatpush.msra.mxu0 0.0
          %571 = vmatpush.msra.mxu0 0.0
          %572 = vmatpush.msra.mxu0 %v549
          %573 = vmatpush.msra.mxu0 %v548
          %574 = vmatpush.msra.mxu0 %v547
          %575 = vmatpush.msra.mxu0 %v546
          %576 = vmatmul.f32.gmra.mxu0 %v555
          %v577 = vpop.f32.mrf.mxu0
          %v578 = vadd.f32 %v552, %v577
          %579 = vmatmul.f32.gmra.mxu0 %v558
          %v580 = vpop.f32.mrf.mxu0
          %v581 = vadd.f32 %v552, %v580
          %582 = vdwg.mxu0
          %583 = vst.msk [vmem:[#allocation2] sm:$0xff] %vm479, %v578
          %584 = vst.msk [vmem:[#allocation2 + $0x8] sm:$0xff] %vm479, %v581
        $region80: #{tpu_custom_call.1} parent=51 // pred_fallthru
          _
        %v585 = vld [vmem:[#allocation2] sm:$0xff]
        %v586 = vld [vmem:[#allocation2 + $0x8] sm:$0xff]
        %v587 = vld [vmem:[%s407] sm:$0xff]
        %v588 = vld [vmem:[%s407 + $0x8] sm:$0xff]
        %v589 = vld [vmem:[%s407 + $0x10] sm:$0xff]
        %v590 = vld [vmem:[%s407 + $0x18] sm:$0xff]
        %v591 = vld [vmem:[%s407 + $0x20] sm:$0xff]
        %v592 = vld [vmem:[%s407 + $0x28] sm:$0xff]
        %v593 = vld [vmem:[%s407 + $0x30] sm:$0xff]
        %v594 = vld [vmem:[%s407 + $0x38] sm:$0xff]
        %v595 = vld [vmem:[%s407 + $0x40] sm:$0xff]
        %v596 = vld [vmem:[%s407 + $0x48] sm:$0xff]
        %v597 = vld [vmem:[%s407 + $0x50] sm:$0xff]
        %v598 = vld [vmem:[%s407 + $0x58] sm:$0xff]
        %v599 = vld [vmem:[%s407 + $0x60] sm:$0xff]
        %v600 = vld [vmem:[%s407 + $0x68] sm:$0xff]
        %v601 = vld [vmem:[%s407 + $0x70] sm:$0xff]
        %v602 = vld [vmem:[%s407 + $0x78] sm:$0xff]
        %v603 = vld [vmem:[%s407 + $0x80] sm:$0xff]
        %v604 = vld [vmem:[%s407 + $0x88] sm:$0xff]
        %v605 = vld [vmem:[%s407 + $0x90] sm:$0xff]
        %v606 = vld [vmem:[%s407 + $0x98] sm:$0xff]
        %v607 = vld [vmem:[%s407 + $0xa0] sm:$0xff]
        %v608 = vld [vmem:[%s407 + $0xa8] sm:$0xff]
        %v609 = vld [vmem:[%s407 + $0xb0] sm:$0xff]
        %v610 = vld [vmem:[%s407 + $0xb8] sm:$0xff]
        %v611 = vld [vmem:[%s407 + $0xc0] sm:$0xff]
        %v612 = vld [vmem:[%s407 + $0xc8] sm:$0xff]
        %v613 = vld [vmem:[%s407 + $0xd0] sm:$0xff]
        %v614 = vld [vmem:[%s407 + $0xd8] sm:$0xff]
        %v615 = vld [vmem:[%s407 + $0xe0] sm:$0xff]
        %v616 = vld [vmem:[%s407 + $0xe8] sm:$0xff]
        %v617 = vld [vmem:[%s407 + $0xf0] sm:$0xff]
        %v618 = vld [vmem:[%s407 + $0xf8] sm:$0xff]
        %v619 = vld [vmem:[%s417] sm:$0xff]
        %v621 = vperm.slane %v619, 0
        %v622 = vperm.slane %v619, 1
        %v623 = vperm.slane %v619, 2
        %v624 = vperm.slane %v619, 3
        %v625 = vperm.slane %v619, 4
        %v626 = vperm.slane %v619, 5
        %v627 = vperm.slane %v619, 6
        %v628 = vperm.slane %v619, 7
        %vm637 = vcmask 261120
        %v639 = vsel %vm637, %v585, 0
        %v642 = vsel %vm637, %v586, 0
        %644 = vmatpush.msra.mxu0 0.0
        %645 = vmatpush.msra.mxu0 0.0
        %646 = vmatpush.msra.mxu0 0.0
        %647 = vmatpush.msra.mxu0 0.0
        %648 = vmatpush.msra.mxu0 0.0
        %649 = vmatpush.msra.mxu0 0.0
        %650 = vmatpush.msra.mxu0 0.0
        %651 = vmatpush.msra.mxu0 0.0
        %652 = vmatpush.msra.mxu0 0.0
        %653 = vmatpush.msra.mxu0 0.0
        %654 = vmatpush.msra.mxu0 0.0
        %655 = vmatpush.msra.mxu0 0.0
        %656 = vmatpush.msra.mxu0 %v611
        %657 = vmatpush.msra.mxu0 %v603
        %658 = vmatpush.msra.mxu0 %v595
        %659 = vmatpush.msra.mxu0 %v587
        %660 = vmatmul.f32.gmra.mxu0 %v639
        %v661 = vpop.f32.mrf.mxu0
        %v662 = vadd.f32 %v621, %v661
        %663 = vmatmul.f32.gmra.mxu0 %v642
        %v664 = vpop.f32.mrf.mxu0
        %v665 = vadd.f32 %v621, %v664
        %666 = vdwg.mxu0
        %667 = vmatpush.msra.mxu0 0.0
        %668 = vmatpush.msra.mxu0 0.0
        %669 = vmatpush.msra.mxu0 0.0
        %670 = vmatpush.msra.mxu0 0.0
        %671 = vmatpush.msra.mxu0 0.0
        %672 = vmatpush.msra.mxu0 0.0
        %673 = vmatpush.msra.mxu0 0.0
        %674 = vmatpush.msra.mxu0 0.0
        %675 = vmatpush.msra.mxu0 0.0
        %676 = vmatpush.msra.mxu0 0.0
        %677 = vmatpush.msra.mxu0 0.0
        %678 = vmatpush.msra.mxu0 0.0
        %679 = vmatpush.msra.mxu0 %v612
        %680 = vmatpush.msra.mxu0 %v604
        %681 = vmatpush.msra.mxu0 %v596
        %682 = vmatpush.msra.mxu0 %v588
        %683 = vmatmul.f32.gmra.mxu0 %v639
        %v684 = vpop.f32.mrf.mxu0
        %v685 = vadd.f32 %v622, %v684
        %686 = vmatmul.f32.gmra.mxu0 %v642
        %v687 = vpop.f32.mrf.mxu0
        %v688 = vadd.f32 %v622, %v687
        %689 = vdwg.mxu0
        %690 = vmatpush.msra.mxu0 0.0
        %691 = vmatpush.msra.mxu0 0.0
        %692 = vmatpush.msra.mxu0 0.0
        %693 = vmatpush.msra.mxu0 0.0
        %694 = vmatpush.msra.mxu0 0.0
        %695 = vmatpush.msra.mxu0 0.0
        %696 = vmatpush.msra.mxu0 0.0
        %697 = vmatpush.msra.mxu0 0.0
        %698 = vmatpush.msra.mxu0 0.0
        %699 = vmatpush.msra.mxu0 0.0
        %700 = vmatpush.msra.mxu0 0.0
        %701 = vmatpush.msra.mxu0 0.0
        %702 = vmatpush.msra.mxu0 %v613
        %703 = vmatpush.msra.mxu0 %v605
        %704 = vmatpush.msra.mxu0 %v597
        %705 = vmatpush.msra.mxu0 %v589
        %706 = vmatmul.f32.gmra.mxu0 %v639
        %v707 = vpop.f32.mrf.mxu0
        %v708 = vadd.f32 %v623, %v707
        %709 = vmatmul.f32.gmra.mxu0 %v642
        %v710 = vpop.f32.mrf.mxu0
        %v711 = vadd.f32 %v623, %v710
        %712 = vdwg.mxu0
        %713 = vmatpush.msra.mxu0 0.0
        %714 = vmatpush.msra.mxu0 0.0
        %715 = vmatpush.msra.mxu0 0.0
        %716 = vmatpush.msra.mxu0 0.0
        %717 = vmatpush.msra.mxu0 0.0
        %718 = vmatpush.msra.mxu0 0.0
        %719 = vmatpush.msra.mxu0 0.0
        %720 = vmatpush.msra.mxu0 0.0
        %721 = vmatpush.msra.mxu0 0.0
        %722 = vmatpush.msra.mxu0 0.0
        %723 = vmatpush.msra.mxu0 0.0
        %724 = vmatpush.msra.mxu0 0.0
        %725 = vmatpush.msra.mxu0 %v614
        %726 = vmatpush.msra.mxu0 %v606
        %727 = vmatpush.msra.mxu0 %v598
        %728 = vmatpush.msra.mxu0 %v590
        %729 = vmatmul.f32.gmra.mxu0 %v639
        %v730 = vpop.f32.mrf.mxu0
        %v731 = vadd.f32 %v624, %v730
        %732 = vmatmul.f32.gmra.mxu0 %v642
        %v733 = vpop.f32.mrf.mxu0
        %v734 = vadd.f32 %v624, %v733
        %735 = vdwg.mxu0
        %736 = vmatpush.msra.mxu0 0.0
        %737 = vmatpush.msra.mxu0 0.0
        %738 = vmatpush.msra.mxu0 0.0
        %739 = vmatpush.msra.mxu0 0.0
        %740 = vmatpush.msra.mxu0 0.0
        %741 = vmatpush.msra.mxu0 0.0
        %742 = vmatpush.msra.mxu0 0.0
        %743 = vmatpush.msra.mxu0 0.0
        %744 = vmatpush.msra.mxu0 0.0
        %745 = vmatpush.msra.mxu0 0.0
        %746 = vmatpush.msra.mxu0 0.0
        %747 = vmatpush.msra.mxu0 0.0
        %748 = vmatpush.msra.mxu0 %v615
        %749 = vmatpush.msra.mxu0 %v607
        %750 = vmatpush.msra.mxu0 %v599
        %751 = vmatpush.msra.mxu0 %v591
        %752 = vmatmul.f32.gmra.mxu0 %v639
        %v753 = vpop.f32.mrf.mxu0
        %v754 = vadd.f32 %v625, %v753
        %755 = vmatmul.f32.gmra.mxu0 %v642
        %v756 = vpop.f32.mrf.mxu0
        %v757 = vadd.f32 %v625, %v756
        %758 = vdwg.mxu0
        %759 = vmatpush.msra.mxu0 0.0
        %760 = vmatpush.msra.mxu0 0.0
        %761 = vmatpush.msra.mxu0 0.0
        %762 = vmatpush.msra.mxu0 0.0
        %763 = vmatpush.msra.mxu0 0.0
        %764 = vmatpush.msra.mxu0 0.0
        %765 = vmatpush.msra.mxu0 0.0
        %766 = vmatpush.msra.mxu0 0.0
        %767 = vmatpush.msra.mxu0 0.0
        %768 = vmatpush.msra.mxu0 0.0
        %769 = vmatpush.msra.mxu0 0.0
        %770 = vmatpush.msra.mxu0 0.0
        %771 = vmatpush.msra.mxu0 %v616
        %772 = vmatpush.msra.mxu0 %v608
        %773 = vmatpush.msra.mxu0 %v600
        %774 = vmatpush.msra.mxu0 %v592
        %775 = vmatmul.f32.gmra.mxu0 %v639
        %v776 = vpop.f32.mrf.mxu0
        %v777 = vadd.f32 %v626, %v776
        %778 = vmatmul.f32.gmra.mxu0 %v642
        %v779 = vpop.f32.mrf.mxu0
        %v780 = vadd.f32 %v626, %v779
        %781 = vdwg.mxu0
        %782 = vmatpush.msra.mxu0 0.0
        %783 = vmatpush.msra.mxu0 0.0
        %784 = vmatpush.msra.mxu0 0.0
        %785 = vmatpush.msra.mxu0 0.0
        %786 = vmatpush.msra.mxu0 0.0
        %787 = vmatpush.msra.mxu0 0.0
        %788 = vmatpush.msra.mxu0 0.0
        %789 = vmatpush.msra.mxu0 0.0
        %790 = vmatpush.msra.mxu0 0.0
        %791 = vmatpush.msra.mxu0 0.0
        %792 = vmatpush.msra.mxu0 0.0
        %793 = vmatpush.msra.mxu0 0.0
        %794 = vmatpush.msra.mxu0 %v617
        %795 = vmatpush.msra.mxu0 %v609
        %796 = vmatpush.msra.mxu0 %v601
        %797 = vmatpush.msra.mxu0 %v593
        %798 = vmatmul.f32.gmra.mxu0 %v639
        %v799 = vpop.f32.mrf.mxu0
        %v800 = vadd.f32 %v627, %v799
        %801 = vmatmul.f32.gmra.mxu0 %v642
        %v802 = vpop.f32.mrf.mxu0
        %v803 = vadd.f32 %v627, %v802
        %804 = vdwg.mxu0
        %805 = vmatpush.msra.mxu0 0.0
        %806 = vmatpush.msra.mxu0 0.0
        %807 = vmatpush.msra.mxu0 0.0
        %808 = vmatpush.msra.mxu0 0.0
        %809 = vmatpush.msra.mxu0 0.0
        %810 = vmatpush.msra.mxu0 0.0
        %811 = vmatpush.msra.mxu0 0.0
        %812 = vmatpush.msra.mxu0 0.0
        %813 = vmatpush.msra.mxu0 0.0
        %814 = vmatpush.msra.mxu0 0.0
        %815 = vmatpush.msra.mxu0 0.0
        %816 = vmatpush.msra.mxu0 0.0
        %817 = vmatpush.msra.mxu0 %v618
        %818 = vmatpush.msra.mxu0 %v610
        %819 = vmatpush.msra.mxu0 %v602
        %820 = vmatpush.msra.mxu0 %v594
        %821 = vmatmul.f32.gmra.mxu0 %v639
        %v822 = vpop.f32.mrf.mxu0
        %v823 = vadd.f32 %v628, %v822
        %824 = vmatmul.f32.gmra.mxu0 %v642
        %v825 = vpop.f32.mrf.mxu0
        %v826 = vadd.f32 %v628, %v825
        %827 = vdwg.mxu0
        %828 = vst [vmem:[%s455] sm:$0xff] %v662
        %829 = vst [vmem:[%s455 + $0x8] sm:$0xff] %v685
        %830 = vst [vmem:[%s455 + $0x10] sm:$0xff] %v708
        %831 = vst [vmem:[%s455 + $0x18] sm:$0xff] %v731
        %832 = vst [vmem:[%s455 + $0x20] sm:$0xff] %v754
        %833 = vst [vmem:[%s455 + $0x28] sm:$0xff] %v777
        %834 = vst [vmem:[%s455 + $0x30] sm:$0xff] %v800
        %835 = vst [vmem:[%s455 + $0x38] sm:$0xff] %v823
        %836 = vst [vmem:[%s455 + $0x40] sm:$0xff] %v665
        %837 = vst [vmem:[%s455 + $0x48] sm:$0xff] %v688
        %838 = vst [vmem:[%s455 + $0x50] sm:$0xff] %v711
        %839 = vst [vmem:[%s455 + $0x58] sm:$0xff] %v734
        %840 = vst [vmem:[%s455 + $0x60] sm:$0xff] %v757
        %841 = vst [vmem:[%s455 + $0x68] sm:$0xff] %v780
        %842 = vst [vmem:[%s455 + $0x70] sm:$0xff] %v803
        %843 = vst [vmem:[%s455 + $0x78] sm:$0xff] %v826
        %s844 = sand.u32 %s235, 1
        %s845 = scalar_lea.sflag [#allocation5], %s844
        %s846 = sand.u32 %s235, 1
        %s847 = smul.addr %s846, 128
        %s848 = scalar_lea.vmem [#allocation13], %s847
        // Predicated region
        $region81: #{tpu_custom_call.1} parent=51 // pred_check
          %p849 = pneg %p245
        $region82: #{tpu_custom_call.1} parent=51 // pred_check_branch
          %851 = sbr.rel (%p849) target = $region84
        $region83: #{tpu_custom_call.1} parent=51 // pred_region
          %s852 = smul.u32 2, %s29
          %s853 = smul.u32 8, %s30
          %855 = vsyncadd %s845, 0
          %s856 = smul.addr %s852, 16
          %s857 = sadd.s32 %s853, %s856
          %s858 = smul.addr %s857, 8
          %s859 = scalar_lea.hbm %s8, %s858
          %s860 = sshll.u32 %s848, 4
          %s861 = int_to_ptr.vmem [resolvable:$true] %s860
          %s862 = sshll.u32 %s859, 4
          %s863 = int_to_ptr.hbm [resolvable:$true] %s862
          %868 = dma.vmem_to_hbm [thread:$0]  %s861, 2048, %s863, %s845, 1024, 2048, 64
        $region84: #{tpu_custom_call.1} parent=51 // pred_fallthru
          _
      $region52: #{tpu_custom_call.1} parent=5 // pred_fallthru
        _
      %p869 = scmp.le.s32.totalorder 2, %s20
      // Predicated region
      $region85: #{tpu_custom_call.1} parent=5 // pred_check
        %p870 = pneg %p869
      $region86: #{tpu_custom_call.1} parent=5 // pred_check_branch
        %872 = sbr.rel (%p870) target = $region88
      $region87: #{tpu_custom_call.1} parent=5 // pred_region
        %s873 = ssub.s32 %s20, 2
        // Predicated region
        $region89: #{tpu_custom_call.1} parent=87 // pred_check
          %p874 = pneg %p251
        $region90: #{tpu_custom_call.1} parent=87 // pred_check_branch
          %876 = sbr.rel (%p874) target = $region92
        $region91: #{tpu_custom_call.1} parent=87 // pred_region
          %s877 = sand.u32 %s236, 1
          %s878 = scalar_lea.sflag [#allocation5], %s877
          %s879 = sand.u32 %s236, 1
          %s880 = smul.addr %s879, 128
          %s881 = scalar_lea.vmem [#allocation13], %s880
          %883 = dma.done %s878, 2048
        $region92: #{tpu_custom_call.1} parent=87 // pred_fallthru
          _
      $region88: #{tpu_custom_call.1} parent=5 // pred_fallthru
        _
    $region6: #{tpu_custom_call.1} parent=1 // loop_footer
      %s24 = sadd.s32 1, %s20
    $region7: #{tpu_custom_call.1} parent=1 // loop_footer_branch
      %19 = sbr.rel target = $region3
    $region8: #{tpu_custom_call.1} parent=1 // loop_exit
      _
    %884 = vsyncpa [#allocation4], 1
    %s885 = scalar_lea.sflag [#allocation4], 1
    %886 = vsyncpa %s885, 1
    %887 = vsyncpa [#allocation7], 1
    %888 = vsyncpa [#allocation10], 1
    %889 = vsyncpa [#allocation5], 1
    %s890 = scalar_lea.sflag [#allocation5], 1
    %891 = vsyncpa %s890, 1

</llo_original>
